<compile_context>
chip_gen: v7x
topology: tpu7x:2x2x1
jax: 0.10.0
libtpu: 0.0.40
codegen_flags: <defaults>
</compile_context>

<pallas_src>
import functools

import jax
import jax.numpy as jnp
from jax.experimental import pallas as pl
from jax.experimental.pallas import tpu as pltpu


def _maxmin_pool_kernel(x_ref, o_ref, *, ks):
    # x_ref: (ks, R, Lb) -- ks = kh*kw window elements, each a full (R, Lb) tile
    # o_ref: (R, Lb)
    v0 = x_ref[0]
    mx = v0
    mn = v0
    # Static unroll: ks-1 pairwise VPU maxima + minima over full tiles.
    for s in range(1, ks):
        v = x_ref[s]
        mx = jnp.maximum(mx, v)
        mn = jnp.minimum(mn, v)
    # max_pool(x) - max_pool(-x) == max(x) + min(x); one dense store per step.
    o_ref[...] = mx + mn


def _pick_tiles(hout, ks, L, itemsize):
    """Choose (rows_per_block, lanes_per_block, vmem_limit_bytes).

    Generation aware: query physical VMEM (v7x exposes half of v5e/v6e) and
    request an explicit scoped limit (v5e's default is only 16 MiB).
    """
    SUB, LANE = 8, 128
    try:
        vmem_physical = int(pltpu.get_tpu_info().vmem_capacity_bytes)
    except Exception:
        vmem_physical = 128 * 1024 * 1024
    vmem_limit = vmem_physical // 2   # scoped limit requested from the compiler
    budget = vmem_limit // 2          # double-buffered working-set target

    def pad(v, m):
        return ((v + m - 1) // m) * m

    def block_bytes(r, lb):
        lbp = pad(lb, LANE)
        rp = pad(r, SUB)
        in_b = ks * rp * lbp * itemsize
        out_b = rp * lbp * itemsize
        return 2 * (in_b + out_b)     # x2: pipeline double-buffering

    # Lane tile: prefer the full width; shrink in multiples of 128 only if a
    # minimal row block would not fit the budget.
    lb = L
    r_min = hout if hout <= SUB else SUB
    while block_bytes(r_min, lb) > budget and lb > LANE:
        lb = max(pad(lb // 2, LANE), LANE)

    # Row tile: small Hout -> take it whole (block dims must be multiples of 8
    # or the full extent).  Otherwise grow in multiples of 8 while it fits,
    # keeping >= 2 row blocks so both v7x TensorCores get work.
    if hout <= SUB:
        r = hout
    else:
        r_cap = max(SUB, ((hout // 2) // SUB) * SUB)
        r = SUB
        while r + SUB <= r_cap and block_bytes(r + SUB, lb) <= budget:
            r += SUB

    # If the row grid collapsed to one step, split the lane axis instead so a
    # parallel dimension remains for the second core (when wide enough).
    if -(-hout // r) == 1 and lb == L and L >= 2 * LANE:
        lb = pad(-(-L // 2), LANE)

    return r, lb, vmem_limit


def maxmin_pooling(x, kernel_size=(4, 4)):
    """MaxMinPooling forward. x: NCHW float array. Returns NCHW."""
    kh, kw = kernel_size
    n, c, h, w = x.shape
    hout, wout = h // kh, w // kw
    # floor-mode cropping (PyTorch MaxPool2d default behaviour)
    x = x[:, :, : hout * kh, : wout * kw]

    ks = kh * kw
    L = wout * n * c

    # NCHW -> (kh*kw, Hout, Wout*N*C): window elements outermost, lane-dense last dim.
    x6 = x.reshape(n, c, hout, kh, wout, kw)
    x_t = jnp.transpose(x6, (3, 5, 2, 4, 0, 1)).reshape(ks, hout, L)

    r, lb, vmem_limit = _pick_tiles(hout, ks, L, x.dtype.itemsize)
    grid = (pl.cdiv(hout, r), pl.cdiv(L, lb))

    kernel = functools.partial(_maxmin_pool_kernel, ks=ks)
    out_t = pl.pallas_call(
        kernel,
        out_shape=jax.ShapeDtypeStruct((hout, L), x.dtype),
        grid_spec=pltpu.PrefetchScalarGridSpec(
            num_scalar_prefetch=0,
            grid=grid,
            in_specs=[
                # One block = all kh*kw window planes for an (R, Lb) output tile.
                pl.BlockSpec((ks, r, lb), lambda i, j: (0, i, j)),
            ],
            out_specs=pl.BlockSpec((r, lb), lambda i, j: (i, j)),
        ),
        compiler_params=pltpu.CompilerParams(
            dimension_semantics=("parallel", "parallel"),
            vmem_limit_bytes=vmem_limit,
        ),
    )(x_t)

    # (Hout, Wout*N*C) -> NCHW
    out = out_t.reshape(hout, wout, n, c)
    return jnp.transpose(out, (2, 3, 0, 1))


if __name__ == "__main__":
    key = jax.random.PRNGKey(0)
    # batch=2, channels=4, spatial=16x16  ->  output (2, 4, 4, 4)
    x = jax.random.normal(key, (2, 4, 16, 16), dtype=jnp.float32)

    y = maxmin_pooling(x, kernel_size=(4, 4))
    y = jax.block_until_ready(y)

    # plain-JAX reference for sanity checking
    n, c, h, w = x.shape
    kh, kw = 4, 4
    xr = x.reshape(n, c, h // kh, kh, w // kw, kw)
    ref = xr.max(axis=(3, 5)) + xr.min(axis=(3, 5))

    assert y.shape == (n, c, h // kh, w // kw), y.shape
    assert jnp.allclose(y, ref, atol=1e-6), float(jnp.max(jnp.abs(y - ref)))
    print("KERNEL_OK")
</pallas_src>

<mosaic_0001>
module attributes {stable_mosaic.version = 11 : i64} {
  func.func @_maxmin_pool_kernel(%arg0: i32, %arg1: i32, %arg2: memref<16x4x32xf32, #tpu.memory_space<vmem>>, %arg3: memref<4x32xf32, #tpu.memory_space<vmem>>) attributes {dimension_semantics = [#tpu.dimension_semantics<parallel>, #tpu.dimension_semantics<parallel>], iteration_bounds = array<i64: 1, 1>, scalar_prefetch = 0 : i64, scratch_operands = 0 : i64, tpu.core_type = #tpu.core_type<tc>, window_params = [{transform_indices = @transform_0, window_bounds = array<i64: 16, 4, 32>}, {transform_indices = @transform_1, window_bounds = array<i64: 4, 32>}]} {
    %c0 = arith.constant 0 : index
    %c0_0 = arith.constant 0 : index
    %c0_1 = arith.constant 0 : index
    %0 = vector.load %arg2[%c0, %c0_0, %c0_1] : memref<16x4x32xf32, #tpu.memory_space<vmem>>, vector<1x4x32xf32>
    %1 = vector.shape_cast %0 : vector<1x4x32xf32> to vector<4x32xf32>
    %c1 = arith.constant 1 : index
    %c0_2 = arith.constant 0 : index
    %c0_3 = arith.constant 0 : index
    %2 = vector.load %arg2[%c1, %c0_2, %c0_3] : memref<16x4x32xf32, #tpu.memory_space<vmem>>, vector<1x4x32xf32>
    %3 = vector.shape_cast %2 : vector<1x4x32xf32> to vector<4x32xf32>
    %4 = arith.maximumf %1, %3 : vector<4x32xf32>
    %5 = arith.minimumf %1, %3 : vector<4x32xf32>
    %c2 = arith.constant 2 : index
    %c0_4 = arith.constant 0 : index
    %c0_5 = arith.constant 0 : index
    %6 = vector.load %arg2[%c2, %c0_4, %c0_5] : memref<16x4x32xf32, #tpu.memory_space<vmem>>, vector<1x4x32xf32>
    %7 = vector.shape_cast %6 : vector<1x4x32xf32> to vector<4x32xf32>
    %8 = arith.maximumf %4, %7 : vector<4x32xf32>
    %9 = arith.minimumf %5, %7 : vector<4x32xf32>
    %c3 = arith.constant 3 : index
    %c0_6 = arith.constant 0 : index
    %c0_7 = arith.constant 0 : index
    %10 = vector.load %arg2[%c3, %c0_6, %c0_7] : memref<16x4x32xf32, #tpu.memory_space<vmem>>, vector<1x4x32xf32>
    %11 = vector.shape_cast %10 : vector<1x4x32xf32> to vector<4x32xf32>
    %12 = arith.maximumf %8, %11 : vector<4x32xf32>
    %13 = arith.minimumf %9, %11 : vector<4x32xf32>
    %c4 = arith.constant 4 : index
    %c0_8 = arith.constant 0 : index
    %c0_9 = arith.constant 0 : index
    %14 = vector.load %arg2[%c4, %c0_8, %c0_9] : memref<16x4x32xf32, #tpu.memory_space<vmem>>, vector<1x4x32xf32>
    %15 = vector.shape_cast %14 : vector<1x4x32xf32> to vector<4x32xf32>
    %16 = arith.maximumf %12, %15 : vector<4x32xf32>
    %17 = arith.minimumf %13, %15 : vector<4x32xf32>
    %c5 = arith.constant 5 : index
    %c0_10 = arith.constant 0 : index
    %c0_11 = arith.constant 0 : index
    %18 = vector.load %arg2[%c5, %c0_10, %c0_11] : memref<16x4x32xf32, #tpu.memory_space<vmem>>, vector<1x4x32xf32>
    %19 = vector.shape_cast %18 : vector<1x4x32xf32> to vector<4x32xf32>
    %20 = arith.maximumf %16, %19 : vector<4x32xf32>
    %21 = arith.minimumf %17, %19 : vector<4x32xf32>
    %c6 = arith.constant 6 : index
    %c0_12 = arith.constant 0 : index
    %c0_13 = arith.constant 0 : index
    %22 = vector.load %arg2[%c6, %c0_12, %c0_13] : memref<16x4x32xf32, #tpu.memory_space<vmem>>, vector<1x4x32xf32>
    %23 = vector.shape_cast %22 : vector<1x4x32xf32> to vector<4x32xf32>
    %24 = arith.maximumf %20, %23 : vector<4x32xf32>
    %25 = arith.minimumf %21, %23 : vector<4x32xf32>
    %c7 = arith.constant 7 : index
    %c0_14 = arith.constant 0 : index
    %c0_15 = arith.constant 0 : index
    %26 = vector.load %arg2[%c7, %c0_14, %c0_15] : memref<16x4x32xf32, #tpu.memory_space<vmem>>, vector<1x4x32xf32>
    %27 = vector.shape_cast %26 : vector<1x4x32xf32> to vector<4x32xf32>
    %28 = arith.maximumf %24, %27 : vector<4x32xf32>
    %29 = arith.minimumf %25, %27 : vector<4x32xf32>
    %c8 = arith.constant 8 : index
    %c0_16 = arith.constant 0 : index
    %c0_17 = arith.constant 0 : index
    %30 = vector.load %arg2[%c8, %c0_16, %c0_17] : memref<16x4x32xf32, #tpu.memory_space<vmem>>, vector<1x4x32xf32>
    %31 = vector.shape_cast %30 : vector<1x4x32xf32> to vector<4x32xf32>
    %32 = arith.maximumf %28, %31 : vector<4x32xf32>
    %33 = arith.minimumf %29, %31 : vector<4x32xf32>
    %c9 = arith.constant 9 : index
    %c0_18 = arith.constant 0 : index
    %c0_19 = arith.constant 0 : index
    %34 = vector.load %arg2[%c9, %c0_18, %c0_19] : memref<16x4x32xf32, #tpu.memory_space<vmem>>, vector<1x4x32xf32>
    %35 = vector.shape_cast %34 : vector<1x4x32xf32> to vector<4x32xf32>
    %36 = arith.maximumf %32, %35 : vector<4x32xf32>
    %37 = arith.minimumf %33, %35 : vector<4x32xf32>
    %c10 = arith.constant 10 : index
    %c0_20 = arith.constant 0 : index
    %c0_21 = arith.constant 0 : index
    %38 = vector.load %arg2[%c10, %c0_20, %c0_21] : memref<16x4x32xf32, #tpu.memory_space<vmem>>, vector<1x4x32xf32>
    %39 = vector.shape_cast %38 : vector<1x4x32xf32> to vector<4x32xf32>
    %40 = arith.maximumf %36, %39 : vector<4x32xf32>
    %41 = arith.minimumf %37, %39 : vector<4x32xf32>
    %c11 = arith.constant 11 : index
    %c0_22 = arith.constant 0 : index
    %c0_23 = arith.constant 0 : index
    %42 = vector.load %arg2[%c11, %c0_22, %c0_23] : memref<16x4x32xf32, #tpu.memory_space<vmem>>, vector<1x4x32xf32>
    %43 = vector.shape_cast %42 : vector<1x4x32xf32> to vector<4x32xf32>
    %44 = arith.maximumf %40, %43 : vector<4x32xf32>
    %45 = arith.minimumf %41, %43 : vector<4x32xf32>
    %c12 = arith.constant 12 : index
    %c0_24 = arith.constant 0 : index
    %c0_25 = arith.constant 0 : index
    %46 = vector.load %arg2[%c12, %c0_24, %c0_25] : memref<16x4x32xf32, #tpu.memory_space<vmem>>, vector<1x4x32xf32>
    %47 = vector.shape_cast %46 : vector<1x4x32xf32> to vector<4x32xf32>
    %48 = arith.maximumf %44, %47 : vector<4x32xf32>
    %49 = arith.minimumf %45, %47 : vector<4x32xf32>
    %c13 = arith.constant 13 : index
    %c0_26 = arith.constant 0 : index
    %c0_27 = arith.constant 0 : index
    %50 = vector.load %arg2[%c13, %c0_26, %c0_27] : memref<16x4x32xf32, #tpu.memory_space<vmem>>, vector<1x4x32xf32>
    %51 = vector.shape_cast %50 : vector<1x4x32xf32> to vector<4x32xf32>
    %52 = arith.maximumf %48, %51 : vector<4x32xf32>
    %53 = arith.minimumf %49, %51 : vector<4x32xf32>
    %c14 = arith.constant 14 : index
    %c0_28 = arith.constant 0 : index
    %c0_29 = arith.constant 0 : index
    %54 = vector.load %arg2[%c14, %c0_28, %c0_29] : memref<16x4x32xf32, #tpu.memory_space<vmem>>, vector<1x4x32xf32>
    %55 = vector.shape_cast %54 : vector<1x4x32xf32> to vector<4x32xf32>
    %56 = arith.maximumf %52, %55 : vector<4x32xf32>
    %57 = arith.minimumf %53, %55 : vector<4x32xf32>
    %c15 = arith.constant 15 : index
    %c0_30 = arith.constant 0 : index
    %c0_31 = arith.constant 0 : index
    %58 = vector.load %arg2[%c15, %c0_30, %c0_31] : memref<16x4x32xf32, #tpu.memory_space<vmem>>, vector<1x4x32xf32>
    %59 = vector.shape_cast %58 : vector<1x4x32xf32> to vector<4x32xf32>
    %60 = arith.maximumf %56, %59 : vector<4x32xf32>
    %61 = arith.minimumf %57, %59 : vector<4x32xf32>
    %62 = arith.addf %60, %61 : vector<4x32xf32>
    %c0_32 = arith.constant 0 : index
    %c0_33 = arith.constant 0 : index
    %63 = vector.load %arg3[%c0_32, %c0_33] : memref<4x32xf32, #tpu.memory_space<vmem>>, vector<4x32xf32>
    tpu.vector_store %arg3[%c0_32, %c0_33], %62 {strides = array<i32>} : memref<4x32xf32, #tpu.memory_space<vmem>>, vector<4x32xf32>,
    return
  }
  func.func @transform_0(%arg0: i32, %arg1: i32) -> (i32, i32, i32) {
    %c0_i32 = arith.constant 0 : i32
    %c0_i32_0 = arith.constant 0 : i32
    return %c0_i32, %arg0, %arg1 : i32, i32, i32
  }
  func.func @transform_1(%arg0: i32, %arg1: i32) -> (i32, i32) {
    %c0_i32 = arith.constant 0 : i32
    return %arg0, %arg1 : i32, i32
  }
}

</mosaic_0001>

<llo_original>
// kernel: tpu_custom_call.1
$region0: #{tpu_custom_call.1}
  #allocation0 [shape = 'u32[]', space=smem, size = 0x4, offset = 0x4, fixed_abs, tag = 'smem constant byte address 0x4 - core index']
  #allocation1 [shape = 'u32[144,128]{1,0:T(1,128)}', space=vmem, size = 0x12000, scoped, tag = 'internal scratch']
  %s0 = inlined_call_operand.hbm [shape: f32[16,4,32], index: 0, kind: input, shape index: {}]
  %s1 = inlined_call_operand.hbm [shape: f32[4,32], index: 1, kind: output, shape index: {}]
  %s2 = sld [smem:[#allocation0]]
  $region18: #{tpu_custom_call.1} parent=0
    _
  %s4 = ssub.s32 1, %s2
  %s5 = scalar_select 0, %s4, %s2
  $region1: #{tpu_custom_call.1} parent=0
    #allocation2 [shape = 'u8[32768]{0}', space=vmem, size = 0x8000, scoped, tag = 'input window, operand 0, single buffered']
    #allocation3 [shape = 's32[1]{0}', space=sflag, size = 0x4, scoped, tag = 'scoped memory for tpu_custom_call.1']
    #allocation4 [shape = 's32[1]{0}', space=sflag, size = 0x4, scoped, tag = 'scoped memory for tpu_custom_call.1']
    #allocation5 [shape = 'u8[2048]{0}', space=vmem, size = 0x800, scoped, tag = 'output window, operand 0, single buffered']
    %6 = vsyncpa [#allocation3], 0
    %7 = vsyncpa [#allocation4], 0
    // Predicated region
    $region2: #{tpu_custom_call.1} parent=1 // pred_check
      _
    $region3: #{tpu_custom_call.1} parent=1 // pred_check_branch
      %9 = sbr.rel (0) target = $region5
    $region4: #{tpu_custom_call.1} parent=1 // pred_region
      %s11 = ssub.s32 1024, 1024
      %12 = vsyncadd [#allocation3], %s11
      %s13 = sshll.u32 [#allocation2], 4
      %s14 = int_to_ptr.vmem [resolvable:$true] %s13
      %19 = dma.hbm_to_vmem [thread:$0]  %s0, 1024, %s14, [#allocation3], 64, 64, 4
    $region5: #{tpu_custom_call.1} parent=1 // pred_fallthru
      _
    // Predicated region
    $region6: #{tpu_custom_call.1} parent=1 // pred_check
      _
    $region7: #{tpu_custom_call.1} parent=1 // pred_check_branch
      %21 = sbr.rel (0) target = $region9
    $region8: #{tpu_custom_call.1} parent=1 // pred_region
      %22 = dma.done [#allocation3], 1024
    $region9: #{tpu_custom_call.1} parent=1 // pred_fallthru
      _
    %v23 = vld [vmem:[#allocation2] sm:$0xf]
    %s24 = scalar_lea.vmem [#allocation2], 4
    %v25 = vld [vmem:[%s24] sm:$0xf]
    %v26 = vmax.f32 %v23, %v25
    %v27 = vmin.f32 %v23, %v25
    %s28 = scalar_lea.vmem [#allocation2], 8
    %v29 = vld [vmem:[%s28] sm:$0xf]
    %v30 = vmax.f32 %v26, %v29
    %v31 = vmin.f32 %v27, %v29
    %s32 = scalar_lea.vmem [#allocation2], 12
    %v33 = vld [vmem:[%s32] sm:$0xf]
    %v34 = vmax.f32 %v30, %v33
    %v35 = vmin.f32 %v31, %v33
    %s36 = scalar_lea.vmem [#allocation2], 16
    %v37 = vld [vmem:[%s36] sm:$0xf]
    %v38 = vmax.f32 %v34, %v37
    %v39 = vmin.f32 %v35, %v37
    %s40 = scalar_lea.vmem [#allocation2], 20
    %v41 = vld [vmem:[%s40] sm:$0xf]
    %v42 = vmax.f32 %v38, %v41
    %v43 = vmin.f32 %v39, %v41
    %s44 = scalar_lea.vmem [#allocation2], 24
    %v45 = vld [vmem:[%s44] sm:$0xf]
    %v46 = vmax.f32 %v42, %v45
    %v47 = vmin.f32 %v43, %v45
    %s48 = scalar_lea.vmem [#allocation2], 28
    %v49 = vld [vmem:[%s48] sm:$0xf]
    %v50 = vmax.f32 %v46, %v49
    %v51 = vmin.f32 %v47, %v49
    %s52 = scalar_lea.vmem [#allocation2], 32
    %v53 = vld [vmem:[%s52] sm:$0xf]
    %v54 = vmax.f32 %v50, %v53
    %v55 = vmin.f32 %v51, %v53
    %s56 = scalar_lea.vmem [#allocation2], 36
    %v57 = vld [vmem:[%s56] sm:$0xf]
    %v58 = vmax.f32 %v54, %v57
    %v59 = vmin.f32 %v55, %v57
    %s60 = scalar_lea.vmem [#allocation2], 40
    %v61 = vld [vmem:[%s60] sm:$0xf]
    %v62 = vmax.f32 %v58, %v61
    %v63 = vmin.f32 %v59, %v61
    %s64 = scalar_lea.vmem [#allocation2], 44
    %v65 = vld [vmem:[%s64] sm:$0xf]
    %v66 = vmax.f32 %v62, %v65
    %v67 = vmin.f32 %v63, %v65
    %s68 = scalar_lea.vmem [#allocation2], 48
    %v69 = vld [vmem:[%s68] sm:$0xf]
    %v70 = vmax.f32 %v66, %v69
    %v71 = vmin.f32 %v67, %v69
    %s72 = scalar_lea.vmem [#allocation2], 52
    %v73 = vld [vmem:[%s72] sm:$0xf]
    %v74 = vmax.f32 %v70, %v73
    %v75 = vmin.f32 %v71, %v73
    %s76 = scalar_lea.vmem [#allocation2], 56
    %v77 = vld [vmem:[%s76] sm:$0xf]
    %v78 = vmax.f32 %v74, %v77
    %v79 = vmin.f32 %v75, %v77
    %s80 = scalar_lea.vmem [#allocation2], 60
    %v81 = vld [vmem:[%s80] sm:$0xf]
    %v82 = vmax.f32 %v78, %v81
    %v83 = vmin.f32 %v79, %v81
    %v84 = vadd.f32 %v82, %v83
    %vm85 = vcmask 257024
    %86 = vst.msk [vmem:[#allocation5] sm:$0xf] %vm85, %v84
    // Predicated region
    $region10: #{tpu_custom_call.1} parent=1 // pred_check
      _
    $region11: #{tpu_custom_call.1} parent=1 // pred_check_branch
      %88 = sbr.rel (0) target = $region13
    $region12: #{tpu_custom_call.1} parent=1 // pred_region
      %s90 = ssub.s32 64, 64
      %91 = vsyncadd [#allocation4], %s90
      %s93 = sshll.u32 [#allocation5], 4
      %s94 = int_to_ptr.vmem [resolvable:$true] %s93
      %96 = dma.vmem_to_hbm [thread:$0]  %s94, 64, %s1, [#allocation4]
    $region13: #{tpu_custom_call.1} parent=1 // pred_fallthru
      _
    // Predicated region
    $region14: #{tpu_custom_call.1} parent=1 // pred_check
      _
    $region15: #{tpu_custom_call.1} parent=1 // pred_check_branch
      %98 = sbr.rel (0) target = $region17
    $region16: #{tpu_custom_call.1} parent=1 // pred_region
      %99 = dma.done [#allocation4], 64
    $region17: #{tpu_custom_call.1} parent=1 // pred_fallthru
      _
    %100 = vsyncpa [#allocation3], 1
    %101 = vsyncpa [#allocation4], 1

</llo_original>
